<compile_context>
chip_gen: v6e
topology: v6e:2x2x1
jax: 0.10.0
libtpu: 0.0.40
codegen_flags: <defaults>
</compile_context>

<pallas_src>
from functools import partial

import jax
import jax.numpy as jnp
from jax.experimental import pallas as pl
from jax.experimental.pallas import tpu as pltpu


# ----------------------------------------------------------------------------
# HBM -> HBM identity copy (opt-in path).
# ----------------------------------------------------------------------------

def _chunk_bounds(M, itemsize, max_chunks=8):
    """Split M rows into <= max_chunks contiguous, sublane-tile-aligned chunks.

    Each chunk start is a multiple of the dtype's sublane packing
    (8 for f32, 16 for bf16, 32 for int8/fp8), so every DMA region is
    tile-aligned in HBM.  The last chunk absorbs any ragged remainder.
    """
    sub = max(8, 32 // max(itemsize, 1))          # sublane rows per packed tile
    n_tiles = -(-M // sub)                        # ceil(M / sub)
    n = max(1, min(max_chunks, n_tiles))
    tiles_per_chunk = -(-n_tiles // n)            # ceil(n_tiles / n)
    rows_per_chunk = tiles_per_chunk * sub
    bounds = []
    start = 0
    while start < M:
        size = min(rows_per_chunk, M - start)
        bounds.append((start, size))
        start += size
    return tuple(bounds)


def _make_hbm_copy_kernel(chunk_bounds):
    """Kernel: copy x -> o entirely with HBM->HBM DMAs (no VMEM, no vregs)."""

    def kernel(x_ref, o_ref, sems):
        copies = []
        # Issue every chunk DMA first so the DMA engines overlap ...
        for i, (start, size) in enumerate(chunk_bounds):
            cp = pltpu.make_async_copy(
                x_ref.at[pl.ds(start, size)],
                o_ref.at[pl.ds(start, size)],
                sems.at[i],
            )
            cp.start()
            copies.append(cp)
        # ... then wait on all of them.
        for cp in copies:
            cp.wait()

    return kernel


def _qkv_copy_pallas(qkv):
    """Materialize a fresh copy of qkv via direct HBM->HBM DMA."""
    b, l, three, h, d = qkv.shape
    M = b * l
    N = three * h * d
    # Row-major reshape is a bitcast; gives a simple 2-D slab to chunk over.
    x2d = qkv.reshape(M, N)

    itemsize = jnp.dtype(qkv.dtype).itemsize
    bounds = _chunk_bounds(M, itemsize)

    out2d = pl.pallas_call(
        _make_hbm_copy_kernel(bounds),
        out_shape=jax.ShapeDtypeStruct((M, N), qkv.dtype),
        # No grid: a single invocation; both operands stay in HBM.
        in_specs=[pl.BlockSpec(memory_space=pl.ANY)],
        out_specs=pl.BlockSpec(memory_space=pl.ANY),
        scratch_shapes=[pltpu.SemaphoreType.DMA((len(bounds),))],
    )(x2d)
    return out2d.reshape(b, l, three, h, d)


_qkv_copy_jit = jax.jit(_qkv_copy_pallas)


# ----------------------------------------------------------------------------
# Module-equivalent wrapper.
# ----------------------------------------------------------------------------

def flash_attn_flops_hook(qkv, *, materialize_copy=False):
    """Pallas equivalent of FlashAttnFlopsHook.forward.

    Args:
      qkv: array of shape (b, l, 3, h, d).
      materialize_copy: if True, return a freshly materialized copy of qkv
        produced by the HBM->HBM DMA Pallas kernel (useful when the caller
        needs a distinct buffer).  Default False: true pass-through, zero HBM
        traffic — exactly the PyTorch hook's behavior.

    Returns:
      (qkv_out, flops) with qkv_out identical to qkv and
      flops == 2*b*l*l*h*d (faithful to the hook's accounting, which is not
      the true flash-attention FLOP count of ~4*b*l^2*h*d).
    """
    b, l, three, h, d = qkv.shape
    assert three == 3, "qkv must have shape (b, l, 3, h, d)"

    # Host-side flops accounting (the module's only 'computation').
    flops = 2 * b * l * l * h * d
    # TODO(synk): the PyTorch module also does `print(b, l, h, d)` and mutates
    # `self.__flops__`; we return the flops count instead of mutating hidden
    # state or printing (to keep stdout clean).

    out = _qkv_copy_jit(qkv) if materialize_copy else qkv
    return out, flops


if __name__ == "__main__":
    key = jax.random.PRNGKey(0)

    # Case 1: default pass-through path (no kernel launch; identity by
    # construction, mirroring the PyTorch hook which returns qkv as-is).
    b, l, h, d = 2, 8, 4, 32
    qkv = jax.random.normal(key, (b, l, 3, h, d), dtype=jnp.float32)
    out, flops = flash_attn_flops_hook(qkv)
    out = jax.block_until_ready(out)
    assert out.shape == qkv.shape and out.dtype == qkv.dtype
    assert bool(jnp.array_equal(out, qkv))
    assert flops == 2 * b * l * l * h * d

    # Case 2: opt-in materialized copy via the HBM->HBM DMA Pallas kernel
    # (f32, M=16 rows -> two tile-aligned chunk DMAs).
    out2, flops2 = flash_attn_flops_hook(qkv, materialize_copy=True)
    out2 = jax.block_until_ready(out2)
    assert out2.shape == qkv.shape and out2.dtype == qkv.dtype
    assert bool(jnp.array_equal(out2, qkv))
    assert flops2 == flops

    # Case 3: bf16 + ragged shape (M=10, N=216 neither multiple of (8,128));
    # the DMA path never touches vregs so ragged lane widths are a non-issue.
    b3, l3, h3, d3 = 2, 5, 3, 24
    qkv3 = jax.random.normal(key, (b3, l3, 3, h3, d3), dtype=jnp.bfloat16)
    out3, flops3 = flash_attn_flops_hook(qkv3, materialize_copy=True)
    out3 = jax.block_until_ready(out3)
    assert out3.shape == qkv3.shape and out3.dtype == qkv3.dtype
    assert bool(jnp.array_equal(out3, qkv3))
    assert flops3 == 2 * b3 * l3 * l3 * h3 * d3

    print("KERNEL_OK")
</pallas_src>

<mosaic_0001>
module attributes {stable_mosaic.version = 11 : i64} {
  func.func @kernel(%arg0: memref<16x384xf32, #tpu.memory_space<any>>, %arg1: memref<16x384xf32, #tpu.memory_space<any>>, %arg2: memref<2x!tpu.dma_semaphore, #tpu.memory_space<semaphore_mem>>) attributes {dimension_semantics = [], scalar_prefetch = 0 : i64, scratch_operands = 1 : i64, tpu.core_type = #tpu.core_type<tc>} {
    %c0_i32 = arith.constant 0 : i32
    %c0_i32_0 = arith.constant 0 : i32
    %c0_i32_1 = arith.constant 0 : i32
    %0 = tpu.memref_slice %arg0[%c0_i32_0, %c0_i32_1] : memref<16x384xf32, #tpu.memory_space<any>> -> memref<8x384xf32, #tpu.memory_space<any>>
    %c0_i32_2 = arith.constant 0 : i32
    %c0_i32_3 = arith.constant 0 : i32
    %1 = tpu.memref_slice %arg1[%c0_i32_2, %c0_i32_3] : memref<16x384xf32, #tpu.memory_space<any>> -> memref<8x384xf32, #tpu.memory_space<any>>
    %2 = tpu.memref_slice %arg2[%c0_i32] : memref<2x!tpu.dma_semaphore, #tpu.memory_space<semaphore_mem>> -> memref<1x!tpu.dma_semaphore, #tpu.memory_space<semaphore_mem>>
    %3 = tpu.memref_squeeze %2 : memref<1x!tpu.dma_semaphore, #tpu.memory_space<semaphore_mem>> -> memref<!tpu.dma_semaphore, #tpu.memory_space<semaphore_mem>>
    tpu.enqueue_dma source(%0 : memref<8x384xf32, #tpu.memory_space<any>>) target(%1 : memref<8x384xf32, #tpu.memory_space<any>>) target_semaphore(%3 : memref<!tpu.dma_semaphore, #tpu.memory_space<semaphore_mem>>)
    %c1_i32 = arith.constant 1 : i32
    %c8_i32 = arith.constant 8 : i32
    %c0_i32_4 = arith.constant 0 : i32
    %4 = tpu.memref_slice %arg0[%c8_i32, %c0_i32_4] : memref<16x384xf32, #tpu.memory_space<any>> -> memref<8x384xf32, #tpu.memory_space<any>>
    %c8_i32_5 = arith.constant 8 : i32
    %c0_i32_6 = arith.constant 0 : i32
    %5 = tpu.memref_slice %arg1[%c8_i32_5, %c0_i32_6] : memref<16x384xf32, #tpu.memory_space<any>> -> memref<8x384xf32, #tpu.memory_space<any>>
    %6 = tpu.memref_slice %arg2[%c1_i32] : memref<2x!tpu.dma_semaphore, #tpu.memory_space<semaphore_mem>> -> memref<1x!tpu.dma_semaphore, #tpu.memory_space<semaphore_mem>>
    %7 = tpu.memref_squeeze %6 : memref<1x!tpu.dma_semaphore, #tpu.memory_space<semaphore_mem>> -> memref<!tpu.dma_semaphore, #tpu.memory_space<semaphore_mem>>
    tpu.enqueue_dma source(%4 : memref<8x384xf32, #tpu.memory_space<any>>) target(%5 : memref<8x384xf32, #tpu.memory_space<any>>) target_semaphore(%7 : memref<!tpu.dma_semaphore, #tpu.memory_space<semaphore_mem>>)
    %c0_i32_7 = arith.constant 0 : i32
    %c0_i32_8 = arith.constant 0 : i32
    %c0_i32_9 = arith.constant 0 : i32
    %8 = tpu.memref_slice %arg0[%c0_i32_8, %c0_i32_9] : memref<16x384xf32, #tpu.memory_space<any>> -> memref<8x384xf32, #tpu.memory_space<any>>
    %c0_i32_10 = arith.constant 0 : i32
    %c0_i32_11 = arith.constant 0 : i32
    %9 = tpu.memref_slice %arg1[%c0_i32_10, %c0_i32_11] : memref<16x384xf32, #tpu.memory_space<any>> -> memref<8x384xf32, #tpu.memory_space<any>>
    %10 = tpu.memref_slice %arg2[%c0_i32_7] : memref<2x!tpu.dma_semaphore, #tpu.memory_space<semaphore_mem>> -> memref<1x!tpu.dma_semaphore, #tpu.memory_space<semaphore_mem>>
    %11 = tpu.memref_squeeze %10 : memref<1x!tpu.dma_semaphore, #tpu.memory_space<semaphore_mem>> -> memref<!tpu.dma_semaphore, #tpu.memory_space<semaphore_mem>>
    tpu.wait_dma2 semaphore(%11 : memref<!tpu.dma_semaphore, #tpu.memory_space<semaphore_mem>>) src(%8 : memref<8x384xf32, #tpu.memory_space<any>>) dst(%9 : memref<8x384xf32, #tpu.memory_space<any>>)
    %c1_i32_12 = arith.constant 1 : i32
    %c8_i32_13 = arith.constant 8 : i32
    %c0_i32_14 = arith.constant 0 : i32
    %12 = tpu.memref_slice %arg0[%c8_i32_13, %c0_i32_14] : memref<16x384xf32, #tpu.memory_space<any>> -> memref<8x384xf32, #tpu.memory_space<any>>
    %c8_i32_15 = arith.constant 8 : i32
    %c0_i32_16 = arith.constant 0 : i32
    %13 = tpu.memref_slice %arg1[%c8_i32_15, %c0_i32_16] : memref<16x384xf32, #tpu.memory_space<any>> -> memref<8x384xf32, #tpu.memory_space<any>>
    %14 = tpu.memref_slice %arg2[%c1_i32_12] : memref<2x!tpu.dma_semaphore, #tpu.memory_space<semaphore_mem>> -> memref<1x!tpu.dma_semaphore, #tpu.memory_space<semaphore_mem>>
    %15 = tpu.memref_squeeze %14 : memref<1x!tpu.dma_semaphore, #tpu.memory_space<semaphore_mem>> -> memref<!tpu.dma_semaphore, #tpu.memory_space<semaphore_mem>>
    tpu.wait_dma2 semaphore(%15 : memref<!tpu.dma_semaphore, #tpu.memory_space<semaphore_mem>>) src(%12 : memref<8x384xf32, #tpu.memory_space<any>>) dst(%13 : memref<8x384xf32, #tpu.memory_space<any>>)
    return
  }
}

</mosaic_0001>

<llo_original>
// kernel: _qkv_copy_pallas.1
$region0: #{_qkv_copy_pallas.1}
  #allocation0 [shape = 'u32[]', space=smem, size = 0x4, offset = 0x4, fixed_abs, tag = 'smem constant byte address 0x4 - core index']
  #allocation1 [shape = 'u32[144,128]{1,0:T(1,128)}', space=vmem, size = 0x12000, scoped, tag = 'internal scratch']
  #allocation2 [shape = 's32[2]{0}', space=sflag, size = 0x8, scoped, tag = 'scratch operand']
  #allocation3 [shape = 's32[]', space=sflag, size = 0x4, offset = 0, fixed_abs, tag = 'sflag constant byte address 0x0 - dummy sync flag']
  #allocation4 [shape = 's32[]', space=sflag, size = 0x4, offset = 0, fixed_abs, tag = 'sflag constant byte address 0x0 - dummy sync flag']
  %s0 = inlined_call_operand.vmem [shape: f32[16,384], index: 0, kind: input, shape index: {}]
  %s1 = inlined_call_operand.vmem [shape: f32[16,384], index: 1, kind: output, shape index: {}]
  %s2 = sld [smem:[#allocation0]]
  $region70: #{_qkv_copy_pallas.1} parent=0
    _
  %s4 = ssub.s32 1, %s2
  %s5 = scalar_select 0, %s4, %s2
  %p7 = scmp.lt.u32.totalorder 24, 8
  %p8 = pneg %p7
  // Predicated region
  $region2: #{_qkv_copy_pallas.1} parent=0 // pred_check
    _
  $region3: #{_qkv_copy_pallas.1} parent=0 // pred_check_branch
    %10 = sbr.rel (%p7) target = $region5
  $region4: #{_qkv_copy_pallas.1} parent=0 // pred_region
    %s26 = sand.u32 24, 7
    %p27 = scmp.eq.s32.totalorder %s26, 0
    // Predicated region
    $region17: #{_qkv_copy_pallas.1} parent=4 // pred_check
      %p28 = pneg %p27
    $region18: #{_qkv_copy_pallas.1} parent=4 // pred_check_branch
      %30 = sbr.rel (%p28) target = $region20
    $region19: #{_qkv_copy_pallas.1} parent=4 // pred_region
      loop: start=0, step=1, limit=1
      $region21: #{_qkv_copy_pallas.1} parent=19 // loop_pre_header
        _
      $region22: #{_qkv_copy_pallas.1} parent=19 // loop_header
        %s32 = sphi 0, %s36
        %p33 = scmp.ge.s32.totalorder %s32, 1
        %s37 = sphi %s0, %s0
        %s38 = sphi %s1, %s1
      $region23: #{_qkv_copy_pallas.1} parent=19 // loop_header_branch
        %35 = sbr.rel (%p33) target = $region27
      $region24: #{_qkv_copy_pallas.1} parent=19 // loop_body
        %v39 = vld [vmem:[%s37] sm:$0xff]
        %40 = vst [vmem:[%s38] sm:$0xff] %v39
        %v41 = vld [vmem:[%s37 + $0x8] sm:$0xff]
        %42 = vst [vmem:[%s38 + $0x8] sm:$0xff] %v41
        %v43 = vld [vmem:[%s37 + $0x10] sm:$0xff]
        %44 = vst [vmem:[%s38 + $0x10] sm:$0xff] %v43
      $region25: #{_qkv_copy_pallas.1} parent=19 // loop_footer
        %s36 = sadd.s32 1, %s32
      $region26: #{_qkv_copy_pallas.1} parent=19 // loop_footer_branch
        %31 = sbr.rel target = $region22
      $region27: #{_qkv_copy_pallas.1} parent=19 // loop_exit
        _
    $region20: #{_qkv_copy_pallas.1} parent=4 // pred_fallthru
      _
    %p45 = pneg %p27
    // Predicated region
    $region28: #{_qkv_copy_pallas.1} parent=4 // pred_check
      _
    $region29: #{_qkv_copy_pallas.1} parent=4 // pred_check_branch
      %47 = sbr.rel (%p27) target = $region31
    $region30: #{_qkv_copy_pallas.1} parent=4 // pred_region
      %s48 = sand.u32 24, 7
    $region31: #{_qkv_copy_pallas.1} parent=4 // pred_fallthru
      _
  $region5: #{_qkv_copy_pallas.1} parent=0 // pred_fallthru
    _
  // Predicated region
  $region6: #{_qkv_copy_pallas.1} parent=0 // pred_check
    %p11 = pneg %p7
  $region7: #{_qkv_copy_pallas.1} parent=0 // pred_check_branch
    %13 = sbr.rel (%p11) target = $region9
  $region8: #{_qkv_copy_pallas.1} parent=0 // pred_region
    %s14 = sshll.u32 1, 24
    %s15 = ssub.s32 %s14, 1
    loop: start=0, step=1, limit=1
    $region10: #{_qkv_copy_pallas.1} parent=8 // loop_pre_header
      _
    $region11: #{_qkv_copy_pallas.1} parent=8 // loop_header
      %s17 = sphi 0, %s21
      %p18 = scmp.ge.s32.totalorder %s17, 1
      %s22 = sphi %s0, %s0
      %s23 = sphi %s1, %s1
    $region12: #{_qkv_copy_pallas.1} parent=8 // loop_header_branch
      %20 = sbr.rel (%p18) target = $region16
    $region13: #{_qkv_copy_pallas.1} parent=8 // loop_body
      %v24 = vld [vmem:[%s22] sm:%s15]
      %25 = vst [vmem:[%s23] sm:%s15] %v24
    $region14: #{_qkv_copy_pallas.1} parent=8 // loop_footer
      %s21 = sadd.s32 1, %s17
    $region15: #{_qkv_copy_pallas.1} parent=8 // loop_footer_branch
      %16 = sbr.rel target = $region11
    $region16: #{_qkv_copy_pallas.1} parent=8 // loop_exit
      _
  $region9: #{_qkv_copy_pallas.1} parent=0 // pred_fallthru
    _
  // Predicated region
  $region32: #{_qkv_copy_pallas.1} parent=0 // pred_check
    _
  $region33: #{_qkv_copy_pallas.1} parent=0 // pred_check_branch
    %51 = sbr.rel (0) target = $region35
  $region34: #{_qkv_copy_pallas.1} parent=0 // pred_region
    %52 = vsyncadd [#allocation2], 384
  $region35: #{_qkv_copy_pallas.1} parent=0 // pred_fallthru
    _
  %s53 = scalar_lea.vmem %s0, 24
  %s54 = scalar_lea.vmem %s1, 24
  %s55 = scalar_lea.sflag [#allocation2], 1
  %p57 = scmp.lt.u32.totalorder 24, 8
  %p58 = pneg %p57
  // Predicated region
  $region36: #{_qkv_copy_pallas.1} parent=0 // pred_check
    _
  $region37: #{_qkv_copy_pallas.1} parent=0 // pred_check_branch
    %60 = sbr.rel (%p57) target = $region39
  $region38: #{_qkv_copy_pallas.1} parent=0 // pred_region
    %s76 = sand.u32 24, 7
    %p77 = scmp.eq.s32.totalorder %s76, 0
    // Predicated region
    $region51: #{_qkv_copy_pallas.1} parent=38 // pred_check
      %p78 = pneg %p77
    $region52: #{_qkv_copy_pallas.1} parent=38 // pred_check_branch
      %80 = sbr.rel (%p78) target = $region54
    $region53: #{_qkv_copy_pallas.1} parent=38 // pred_region
      loop: start=0, step=1, limit=1
      $region55: #{_qkv_copy_pallas.1} parent=53 // loop_pre_header
        _
      $region56: #{_qkv_copy_pallas.1} parent=53 // loop_header
        %s82 = sphi 0, %s86
        %p83 = scmp.ge.s32.totalorder %s82, 1
        %s87 = sphi %s53, %s53
        %s88 = sphi %s54, %s54
      $region57: #{_qkv_copy_pallas.1} parent=53 // loop_header_branch
        %85 = sbr.rel (%p83) target = $region61
      $region58: #{_qkv_copy_pallas.1} parent=53 // loop_body
        %v89 = vld [vmem:[%s87] sm:$0xff]
        %90 = vst [vmem:[%s88] sm:$0xff] %v89
        %v91 = vld [vmem:[%s87 + $0x8] sm:$0xff]
        %92 = vst [vmem:[%s88 + $0x8] sm:$0xff] %v91
        %v93 = vld [vmem:[%s87 + $0x10] sm:$0xff]
        %94 = vst [vmem:[%s88 + $0x10] sm:$0xff] %v93
      $region59: #{_qkv_copy_pallas.1} parent=53 // loop_footer
        %s86 = sadd.s32 1, %s82
      $region60: #{_qkv_copy_pallas.1} parent=53 // loop_footer_branch
        %81 = sbr.rel target = $region56
      $region61: #{_qkv_copy_pallas.1} parent=53 // loop_exit
        _
    $region54: #{_qkv_copy_pallas.1} parent=38 // pred_fallthru
      _
    %p95 = pneg %p77
    // Predicated region
    $region62: #{_qkv_copy_pallas.1} parent=38 // pred_check
      _
    $region63: #{_qkv_copy_pallas.1} parent=38 // pred_check_branch
      %97 = sbr.rel (%p77) target = $region65
    $region64: #{_qkv_copy_pallas.1} parent=38 // pred_region
      %s98 = sand.u32 24, 7
    $region65: #{_qkv_copy_pallas.1} parent=38 // pred_fallthru
      _
  $region39: #{_qkv_copy_pallas.1} parent=0 // pred_fallthru
    _
  // Predicated region
  $region40: #{_qkv_copy_pallas.1} parent=0 // pred_check
    %p61 = pneg %p57
  $region41: #{_qkv_copy_pallas.1} parent=0 // pred_check_branch
    %63 = sbr.rel (%p61) target = $region43
  $region42: #{_qkv_copy_pallas.1} parent=0 // pred_region
    %s64 = sshll.u32 1, 24
    %s65 = ssub.s32 %s64, 1
    loop: start=0, step=1, limit=1
    $region44: #{_qkv_copy_pallas.1} parent=42 // loop_pre_header
      _
    $region45: #{_qkv_copy_pallas.1} parent=42 // loop_header
      %s67 = sphi 0, %s71
      %p68 = scmp.ge.s32.totalorder %s67, 1
      %s72 = sphi %s53, %s53
      %s73 = sphi %s54, %s54
    $region46: #{_qkv_copy_pallas.1} parent=42 // loop_header_branch
      %70 = sbr.rel (%p68) target = $region50
    $region47: #{_qkv_copy_pallas.1} parent=42 // loop_body
      %v74 = vld [vmem:[%s72] sm:%s65]
      %75 = vst [vmem:[%s73] sm:%s65] %v74
    $region48: #{_qkv_copy_pallas.1} parent=42 // loop_footer
      %s71 = sadd.s32 1, %s67
    $region49: #{_qkv_copy_pallas.1} parent=42 // loop_footer_branch
      %66 = sbr.rel target = $region45
    $region50: #{_qkv_copy_pallas.1} parent=42 // loop_exit
      _
  $region43: #{_qkv_copy_pallas.1} parent=0 // pred_fallthru
    _
  // Predicated region
  $region66: #{_qkv_copy_pallas.1} parent=0 // pred_check
    _
  $region67: #{_qkv_copy_pallas.1} parent=0 // pred_check_branch
    %101 = sbr.rel (0) target = $region69
  $region68: #{_qkv_copy_pallas.1} parent=0 // pred_region
    %102 = vsyncadd %s55, 384
  $region69: #{_qkv_copy_pallas.1} parent=0 // pred_fallthru
    _
  %s103 = smul.u32 8, 1
  %s104 = smul.u32 %s103, 3
  %s105 = sshll.u32 %s104, 4
  %106 = dma.done [#allocation2], %s105
  %s107 = sshll.u32 %s104, 4
  %108 = dma.done %s55, %s107
  %109 = vsyncmov [#allocation2]
  %s110 = vpop.sfrf %109
  %p111 = scmp.eq.s32.totalorder %s110, 0
  %p112 = pneg %p111
  %114 = shalt.err (%p112)
  %s115 = scalar_lea.sflag [#allocation2], 1
  %116 = vsyncmov %s115
  %s117 = vpop.sfrf %116
  %p118 = scmp.eq.s32.totalorder %s117, 0
  %p119 = pneg %p118
  %121 = shalt.err (%p119)

</llo_original>
